<compile_context>
chip_gen: v7x
topology: tpu7x:2x2x1
jax: 0.10.0
libtpu: 0.0.40
codegen_flags: <defaults>
</compile_context>

<pallas_src>
import functools

import jax
import jax.numpy as jnp
from jax.experimental import pallas as pl
from jax.experimental.pallas import tpu as pltpu


_LANE = 128
_K_PAD = 16  # fc1 contraction dim: 9 features + 1 ones row (bias fold), padded to 16.


def _round_up(x, m):
    return ((x + m - 1) // m) * m


def _cdiv(a, b):
    return (a + b - 1) // b


def _vmem_capacity_bytes():
    """Physical VMEM of the local chip (falls back to 128 MiB)."""
    try:
        cap = getattr(pltpu.get_tpu_info(), "vmem_capacity_bytes", None)
        if cap:
            return int(cap)
    except Exception:
        pass
    return 128 * 1024 * 1024


def _default_bf16_epilogue():
    """bf16 epilogue on v6e/v7x; f32 on v5e (no bf16 VPU -> emulated bf16 ALU)."""
    try:
        kind = jax.devices()[0].device_kind.lower()
        if "v5 lite" in kind or "v5lite" in kind or "v5e" in kind:
            return False
    except Exception:
        pass
    return True


def _mlp_kernel(x_ref, w1_ref, w2_ref, b2_ref, w3t_ref, b3_ref, o_ref,
                *, approx_sigmoid):
    # x_ref: (16, tile) in compute dtype, batch on lanes; row 9 is ones (bias
    # fold), rows 10..15 are zero.  w1_ref: (128, 16) with fc1.bias as column 9,
    # so h1 comes out of the MXU with the bias already added.
    ep_dtype = b2_ref.dtype

    # fc1 (+ folded b1) + relu.  f32 MXU accumulation; epilogue in ep_dtype
    # (bf16 on v6e/v7x) to halve VALU passes and h1 VMEM spill traffic.
    h1 = jnp.dot(w1_ref[...], x_ref[...], preferred_element_type=jnp.float32)
    h1 = jnp.maximum(h1.astype(ep_dtype), 0)                      # (128, tile)

    # fc2 + b2 + relu.
    h2 = jnp.dot(w2_ref[...], h1.astype(w2_ref.dtype),
                 preferred_element_type=jnp.float32)
    h2 = jnp.maximum(h2.astype(ep_dtype) + b2_ref[...], 0)        # (32, tile)

    # F.dropout(x, training=self.training): identity in eval / inference mode.
    # TODO(synk): add pltpu.prng_seed / stateful_bernoulli masking if
    #             training-mode dropout semantics are ever needed.

    # fc3 off the MXU (K=32, N=1): VPU scale + sublane (XLU) reduce; the f32
    # w3t column forces f32 promotion for the reduction.  b3 is a scalar in SMEM.
    logits = jnp.sum(h2 * w3t_ref[...], axis=0, keepdims=True) + b3_ref[0, 0]

    # sigmoid = 1 / (1 + exp(-x)); exp lands on the EUP.  Approximate
    # reciprocal (also EUP) on the fast bf16 path, exact divide on the f32 path.
    z = 1.0 + jnp.exp(-logits)
    if approx_sigmoid:
        o_ref[...] = pl.reciprocal(z, approx=True)                 # (1, tile)
    else:
        o_ref[...] = 1.0 / z


@functools.partial(jax.jit, static_argnames=("tile_b", "use_bf16", "bf16_epilogue"))
def neural_network_forward(x, params, *, tile_b=None, use_bf16=True,
                           bf16_epilogue=None):
    """x: (B, 9) float32.  params: torch-layout weights (out_features, in_features).

    tile_b: batch tile (multiple of 128).  None -> auto: ~8K columns on 64 MiB-VMEM
    parts (v7x), ~16K on 128 MiB parts (v5e/v6e); the grid is split into >= 2 steps
    whenever batch >= 256 so both v7x TensorCores get work.
    """
    B, F = x.shape
    assert F == 9, x.shape
    compute_dtype = jnp.bfloat16 if use_bf16 else jnp.float32
    if bf16_epilogue is None:
        bf16_epilogue = _default_bf16_epilogue()
    ep_dtype = jnp.bfloat16 if (use_bf16 and bf16_epilogue) else jnp.float32

    # --- generation-tuned tile / VMEM budget ------------------------------------
    vmem_cap = _vmem_capacity_bytes()
    vmem_limit = min(64 * 1024 * 1024, (3 * vmem_cap) // 4)  # 64 MiB (48 MiB on v7x)
    if tile_b is None:
        tile_b = 8192 if vmem_cap <= 64 * 1024 * 1024 else 16384

    tile_cap = max(_LANE, (int(tile_b) // _LANE) * _LANE)
    b_pad128 = _round_up(B, _LANE)
    n_steps = _cdiv(b_pad128, tile_cap)
    if b_pad128 >= 2 * _LANE:
        n_steps = max(n_steps, 2)          # keep both v7x TensorCores busy
    tile = _round_up(_cdiv(b_pad128, n_steps), _LANE)
    b_pad = n_steps * tile

    # --- parameter prep (tiny, traced once) -------------------------------------
    w1 = params["w1"].astype(jnp.float32)                       # (128, 9)
    b1 = params["b1"].reshape(-1, 1).astype(jnp.float32)        # (128, 1)
    w1_aug = jnp.concatenate(
        [w1, b1, jnp.zeros((w1.shape[0], _K_PAD - 10), jnp.float32)], axis=1
    ).astype(compute_dtype)                                     # (128, 16): bias folded
    w2 = params["w2"].astype(compute_dtype)                     # (32, 128)
    b2 = params["b2"].reshape(-1, 1).astype(ep_dtype)           # (32, 1)
    w3t = params["w3"].T.astype(jnp.float32)                    # (32, 1)
    b3 = params["b3"].reshape(1, 1).astype(jnp.float32)         # (1, 1) scalar -> SMEM

    # --- input prep: ones column (bias fold) + transpose + cast + pad -----------
    # Under jit this fuses into one XLA pass over x (no standalone transpose pass).
    ones = jnp.ones((B, 1), jnp.float32)
    x_t = jnp.concatenate([x.astype(jnp.float32), ones], axis=1).T   # (10, B)
    x_t = x_t.astype(compute_dtype)
    x_t = jnp.pad(x_t, ((0, _K_PAD - 10), (0, b_pad - B)))           # (16, b_pad)
    # Padded batch columns are all-zero (including the ones row), so they produce
    # finite sigmoid(bias-only) values that are sliced off below.

    def resident(shape):
        # Small weight/bias blocks: same block every grid step -> stay in VMEM.
        return pl.BlockSpec(shape, lambda i: (0, 0))

    kernel = functools.partial(_mlp_kernel, approx_sigmoid=bool(use_bf16))

    out_t = pl.pallas_call(
        kernel,
        out_shape=jax.ShapeDtypeStruct((1, b_pad), jnp.float32),
        grid=(b_pad // tile,),
        in_specs=[
            pl.BlockSpec((_K_PAD, tile), lambda i: (0, i)),          # x^T tile
            resident(w1_aug.shape),
            resident(w2.shape),
            resident(b2.shape),
            resident(w3t.shape),
            pl.BlockSpec(memory_space=pltpu.MemorySpace.SMEM),       # scalar b3
        ],
        out_specs=pl.BlockSpec((1, tile), lambda i: (0, i)),         # lane-dense output
        compiler_params=pltpu.CompilerParams(
            dimension_semantics=("parallel",),                       # megacore on v7x
            vmem_limit_bytes=int(vmem_limit),
        ),
    )(x_t, w1_aug, w2, b2, w3t, b3)

    return out_t[:, :B].T                                            # (B, 1)


def init_params(key):
    """Deterministic init mimicking torch.nn.Linear (uniform +/- 1/sqrt(fan_in)).

    Weights stored torch-style as (out_features, in_features); biases as (out_features,).
    """
    def linear(k, fan_in, fan_out):
        kw, kb = jax.random.split(k)
        bound = 1.0 / (fan_in ** 0.5)
        w = jax.random.uniform(kw, (fan_out, fan_in), jnp.float32, -bound, bound)
        b = jax.random.uniform(kb, (fan_out,), jnp.float32, -bound, bound)
        return w, b

    k1, k2, k3 = jax.random.split(key, 3)
    w1, b1 = linear(k1, 9, 128)
    w2, b2 = linear(k2, 128, 32)
    w3, b3 = linear(k3, 32, 1)
    return {"w1": w1, "b1": b1, "w2": w2, "b2": b2, "w3": w3, "b3": b3}


def _reference_forward(x, p):
    """Pure-JAX f32 reference matching the torch module (eval mode)."""
    h1 = jnp.maximum(x @ p["w1"].T + p["b1"], 0.0)
    h2 = jnp.maximum(h1 @ p["w2"].T + p["b2"], 0.0)
    logits = h2 @ p["w3"].T + p["b3"]
    return jax.nn.sigmoid(logits)


if __name__ == "__main__":
    key = jax.random.PRNGKey(0)
    kx, kp = jax.random.split(key)

    B = 8
    x = jax.random.normal(kx, (B, 9), dtype=jnp.float32)
    params = init_params(kp)
    ref = _reference_forward(x, params)

    # Default path: bf16 MXU operands + bf16 epilogue, f32 accumulation.
    out = jax.block_until_ready(neural_network_forward(x, params))
    assert out.shape == (B, 1), out.shape
    assert jnp.allclose(out, ref, atol=3e-2, rtol=3e-2), "bf16 path mismatch vs. reference"

    # f32 path (exact sigmoid divide): tight check of the kernel structure itself.
    out_f32 = jax.block_until_ready(
        neural_network_forward(x, params, use_bf16=False, bf16_epilogue=False))
    assert out_f32.shape == (B, 1), out_f32.shape
    assert jnp.allclose(out_f32, ref, atol=1e-4, rtol=1e-4), "f32 path mismatch vs. reference"

    print("KERNEL_OK")
</pallas_src>

<mosaic_0001>
module attributes {stable_mosaic.version = 11 : i64} {
  func.func @_mlp_kernel(%arg0: i32, %arg1: memref<16x128xbf16, #tpu.memory_space<vmem>>, %arg2: memref<128x16xbf16, #tpu.memory_space<vmem>>, %arg3: memref<32x128xbf16, #tpu.memory_space<vmem>>, %arg4: memref<32x1xbf16, #tpu.memory_space<vmem>>, %arg5: memref<32x1xf32, #tpu.memory_space<vmem>>, %arg6: memref<1x1xf32, #tpu.memory_space<smem>>, %arg7: memref<1x128xf32, #tpu.memory_space<vmem>>) attributes {dimension_semantics = [#tpu.dimension_semantics<parallel>], iteration_bounds = array<i64: 1>, scalar_prefetch = 0 : i64, scratch_operands = 0 : i64, tpu.core_type = #tpu.core_type<tc>, window_params = [{transform_indices = @transform_0, window_bounds = array<i64: 16, 128>}, {pipeline_mode = #tpu.pipeline_mode<synchronous>, transform_indices = @transform_1, window_bounds = array<i64: 128, 16>}, {pipeline_mode = #tpu.pipeline_mode<synchronous>, transform_indices = @transform_2, window_bounds = array<i64: 32, 128>}, {pipeline_mode = #tpu.pipeline_mode<synchronous>, transform_indices = @transform_3, window_bounds = array<i64: 32, 1>}, {pipeline_mode = #tpu.pipeline_mode<synchronous>, transform_indices = @transform_4, window_bounds = array<i64: 32, 1>}, {transform_indices = @transform_5, window_bounds = array<i64: 1, 1>}, {transform_indices = @transform_6, window_bounds = array<i64: 1, 128>}]} {
    %c0 = arith.constant 0 : index
    %c0_0 = arith.constant 0 : index
    %0 = vector.load %arg2[%c0, %c0_0] : memref<128x16xbf16, #tpu.memory_space<vmem>>, vector<128x16xbf16>
    %c0_1 = arith.constant 0 : index
    %c0_2 = arith.constant 0 : index
    %1 = vector.load %arg1[%c0_1, %c0_2] : memref<16x128xbf16, #tpu.memory_space<vmem>>, vector<16x128xbf16>
    %cst = arith.constant dense<0.000000e+00> : vector<128x128xf32>
    %2 = tpu.matmul %0, %1, %cst {dimension_numbers = #tpu.dot_dimension_numbers<[1], [0], [0], [1], [0, 0, 1, 1], [], []>} : vector<128x16xbf16>, vector<16x128xbf16>, vector<128x128xf32> -> vector<128x128xf32>
    %3 = arith.truncf %2 : vector<128x128xf32> to vector<128x128xbf16>
    %cst_3 = arith.constant 0.000000e+00 : bf16
    %4 = vector.broadcast %cst_3 : bf16 to vector<128x128xbf16>
    %5 = arith.maximumf %3, %4 : vector<128x128xbf16>
    %c0_4 = arith.constant 0 : index
    %c0_5 = arith.constant 0 : index
    %6 = vector.load %arg3[%c0_4, %c0_5] : memref<32x128xbf16, #tpu.memory_space<vmem>>, vector<32x128xbf16>
    %cst_6 = arith.constant dense<0.000000e+00> : vector<32x128xf32>
    %7 = tpu.matmul %6, %5, %cst_6 {dimension_numbers = #tpu.dot_dimension_numbers<[1], [0], [0], [1], [0, 0, 1, 1], [], []>} : vector<32x128xbf16>, vector<128x128xbf16>, vector<32x128xf32> -> vector<32x128xf32>
    %8 = arith.truncf %7 : vector<32x128xf32> to vector<32x128xbf16>
    %c0_7 = arith.constant 0 : index
    %c0_8 = arith.constant 0 : index
    %9 = vector.load %arg4[%c0_7, %c0_8] : memref<32x1xbf16, #tpu.memory_space<vmem>>, vector<32x1xbf16>
    %10 = vector.broadcast %9 : vector<32x1xbf16> to vector<32x128xbf16>
    %11 = arith.addf %8, %10 : vector<32x128xbf16>
    %cst_9 = arith.constant 0.000000e+00 : bf16
    %12 = vector.broadcast %cst_9 : bf16 to vector<32x128xbf16>
    %13 = arith.maximumf %11, %12 : vector<32x128xbf16>
    %c0_10 = arith.constant 0 : index
    %c0_11 = arith.constant 0 : index
    %14 = vector.load %arg5[%c0_10, %c0_11] : memref<32x1xf32, #tpu.memory_space<vmem>>, vector<32x1xf32>
    %15 = arith.extf %13 : vector<32x128xbf16> to vector<32x128xf32>
    %16 = vector.broadcast %14 : vector<32x1xf32> to vector<32x128xf32>
    %17 = arith.mulf %15, %16 : vector<32x128xf32>
    %cst_12 = arith.constant dense<0.000000e+00> : vector<128xf32>
    %18 = vector.multi_reduction <add>, %17, %cst_12 [0] : vector<32x128xf32> to vector<128xf32>
    %19 = vector.shape_cast %18 : vector<128xf32> to vector<1x128xf32>
    %c0_13 = arith.constant 0 : index
    %c0_14 = arith.constant 0 : index
    %20 = memref.load %arg6[%c0_13, %c0_14] : memref<1x1xf32, #tpu.memory_space<smem>>
    %21 = vector.broadcast %20 : f32 to vector<1x128xf32>
    %22 = arith.addf %19, %21 : vector<1x128xf32>
    %cst_15 = arith.constant 0.000000e+00 : f32
    %23 = vector.broadcast %cst_15 : f32 to vector<1x128xf32>
    %24 = arith.subf %23, %22 : vector<1x128xf32>
    %25 = math.exp %24 : vector<1x128xf32>
    %cst_16 = arith.constant 1.000000e+00 : f32
    %26 = vector.broadcast %cst_16 : f32 to vector<1x128xf32>
    %27 = arith.addf %26, %25 : vector<1x128xf32>
    %28 = tpu.reciprocal %27 {approx = true} : vector<1x128xf32> -> vector<1x128xf32>
    %c0_17 = arith.constant 0 : index
    %c0_18 = arith.constant 0 : index
    %29 = vector.load %arg7[%c0_17, %c0_18] : memref<1x128xf32, #tpu.memory_space<vmem>>, vector<1x128xf32>
    tpu.vector_store %arg7[%c0_17, %c0_18], %28 {strides = array<i32>} : memref<1x128xf32, #tpu.memory_space<vmem>>, vector<1x128xf32>,
    return
  }
  func.func @transform_0(%arg0: i32) -> (i32, i32) {
    %c0_i32 = arith.constant 0 : i32
    %c0_i32_0 = arith.constant 0 : i32
    return %c0_i32, %arg0 : i32, i32
  }
  func.func @transform_1(%arg0: i32) -> (i32, i32) {
    %c0_i32 = arith.constant 0 : i32
    %c0_i32_0 = arith.constant 0 : i32
    %c0_i32_1 = arith.constant 0 : i32
    return %c0_i32, %c0_i32_0 : i32, i32
  }
  func.func @transform_2(%arg0: i32) -> (i32, i32) {
    %c0_i32 = arith.constant 0 : i32
    %c0_i32_0 = arith.constant 0 : i32
    %c0_i32_1 = arith.constant 0 : i32
    return %c0_i32, %c0_i32_0 : i32, i32
  }
  func.func @transform_3(%arg0: i32) -> (i32, i32) {
    %c0_i32 = arith.constant 0 : i32
    %c0_i32_0 = arith.constant 0 : i32
    %c0_i32_1 = arith.constant 0 : i32
    return %c0_i32, %c0_i32_0 : i32, i32
  }
  func.func @transform_4(%arg0: i32) -> (i32, i32) {
    %c0_i32 = arith.constant 0 : i32
    %c0_i32_0 = arith.constant 0 : i32
    %c0_i32_1 = arith.constant 0 : i32
    return %c0_i32, %c0_i32_0 : i32, i32
  }
  func.func @transform_5(%arg0: i32) -> (i32, i32) {
    %c0_i32 = arith.constant 0 : i32
    %c0_i32_0 = arith.constant 0 : i32
    %c0_i32_1 = arith.constant 0 : i32
    return %c0_i32, %c0_i32_0 : i32, i32
  }
  func.func @transform_6(%arg0: i32) -> (i32, i32) {
    %c0_i32 = arith.constant 0 : i32
    %c0_i32_0 = arith.constant 0 : i32
    return %c0_i32, %arg0 : i32, i32
  }
}

</mosaic_0001>

<llo_original>
// kernel: neural_network_forward.1
$region0: #{neural_network_forward.1}
  #allocation0 [shape = 'u32[]', space=smem, size = 0x4, offset = 0x4, fixed_abs, tag = 'smem constant byte address 0x4 - core index']
  #allocation1 [shape = 'u32[144,128]{1,0:T(1,128)}', space=vmem, size = 0x12000, scoped, tag = 'internal scratch']
  #allocation2 [shape = 'f32[1,1]{1,0:T(1,128)S(6)}', space=smem, size = 0x200, scoped, tag = 'scoped memory for neural_network_forward.1']
  %s0 = inlined_call_operand.hbm [shape: bf16[16,128], index: 0, kind: input, shape index: {}]
  %s1 = inlined_call_operand.hbm [shape: bf16[128,16], index: 1, kind: input, shape index: {}]
  %s2 = inlined_call_operand.hbm [shape: bf16[32,128], index: 2, kind: input, shape index: {}]
  %s3 = inlined_call_operand.hbm [shape: bf16[32,1], index: 3, kind: input, shape index: {}]
  %s4 = inlined_call_operand.hbm [shape: f32[32,1], index: 4, kind: input, shape index: {}]
  %s5 = inlined_call_operand.<no memory space> [shape: f32[1,1], index: 5, kind: input, shape index: {}]
  %s6 = inlined_call_operand.hbm [shape: f32[1,128], index: 6, kind: output, shape index: {}]
  %s7 = sld [smem:[#allocation0]]
  $region54: #{neural_network_forward.1} parent=0
    _
  %s9 = ssub.s32 1, %s7
  %s10 = scalar_select 0, %s9, %s7
  %11 = sst [smem:[#allocation2]] %s5
  $region1: #{neural_network_forward.1} parent=0
    #allocation3 [shape = 'u8[4096]{0}', space=vmem, size = 0x1000, scoped, tag = 'input window, operand 0, single buffered']
    #allocation4 [shape = 's32[1]{0}', space=sflag, size = 0x4, scoped, tag = 'scoped memory for neural_network_forward.1']
    #allocation5 [shape = 's32[1]{0}', space=sflag, size = 0x4, scoped, tag = 'scoped memory for neural_network_forward.1']
    #allocation6 [shape = 'u8[32768]{0}', space=vmem, size = 0x8000, scoped, tag = 'input window, operand 1, single buffered']
    #allocation7 [shape = 's32[1]{0}', space=sflag, size = 0x4, scoped, tag = 'scoped memory for neural_network_forward.1']
    #allocation8 [shape = 'u8[8192]{0}', space=vmem, size = 0x2000, scoped, tag = 'input window, operand 2, single buffered']
    #allocation9 [shape = 'u8[8192]{0}', space=vmem, size = 0x2000, scoped, tag = 'input window, operand 3, single buffered']
    #allocation10 [shape = 's32[1]{0}', space=sflag, size = 0x4, scoped, tag = 'scoped memory for neural_network_forward.1']
    #allocation11 [shape = 'u8[16384]{0}', space=vmem, size = 0x4000, scoped, tag = 'input window, operand 4, single buffered']
    #allocation12 [shape = 'u8[512]{0}', space=vmem, size = 0x400, scoped, tag = 'output window, operand 0, single buffered']
    %12 = vsyncpa [#allocation4], 0
    %13 = vsyncpa [#allocation7], 0
    %14 = vsyncpa [#allocation10], 0
    %15 = vsyncpa [#allocation5], 0
    // Predicated region
    $region2: #{neural_network_forward.1} parent=1 // pred_check
      _
    $region3: #{neural_network_forward.1} parent=1 // pred_check_branch
      %17 = sbr.rel (0) target = $region5
    $region4: #{neural_network_forward.1} parent=1 // pred_region
      %s19 = ssub.s32 128, 128
      %20 = vsyncadd [#allocation4], %s19
      %s21 = sshll.u32 [#allocation3], 4
      %s22 = int_to_ptr.vmem [resolvable:$true] %s21
      %27 = dma.hbm_to_vmem [thread:$0]  %s0, 128, %s22, [#allocation4], 64, 64, 4
    $region5: #{neural_network_forward.1} parent=1 // pred_fallthru
      _
    // Predicated region
    $region6: #{neural_network_forward.1} parent=1 // pred_check
      _
    $region7: #{neural_network_forward.1} parent=1 // pred_check_branch
      %29 = sbr.rel (0) target = $region9
    $region8: #{neural_network_forward.1} parent=1 // pred_region
      %s31 = ssub.s32 1024, 1024
      %32 = vsyncadd [#allocation7], %s31
      %s33 = sshll.u32 [#allocation6], 4
      %s34 = int_to_ptr.vmem [resolvable:$true] %s33
      %39 = dma.hbm_to_vmem [thread:$0]  %s1, 1024, %s34, [#allocation7], 64, 64, 4
    $region9: #{neural_network_forward.1} parent=1 // pred_fallthru
      _
    // Predicated region
    $region10: #{neural_network_forward.1} parent=1 // pred_check
      _
    $region11: #{neural_network_forward.1} parent=1 // pred_check_branch
      %41 = sbr.rel (0) target = $region13
    $region12: #{neural_network_forward.1} parent=1 // pred_region
      %s43 = ssub.s32 256, 256
      %44 = vsyncadd [#allocation7], %s43
      %s45 = sshll.u32 [#allocation8], 4
      %s46 = int_to_ptr.vmem [resolvable:$true] %s45
      %51 = dma.hbm_to_vmem [thread:$0]  %s2, 256, %s46, [#allocation7], 64, 64, 4
    $region13: #{neural_network_forward.1} parent=1 // pred_fallthru
      _
    // Predicated region
    $region14: #{neural_network_forward.1} parent=1 // pred_check
      _
    $region15: #{neural_network_forward.1} parent=1 // pred_check_branch
      %53 = sbr.rel (0) target = $region17
    $region16: #{neural_network_forward.1} parent=1 // pred_region
      %s55 = ssub.s32 256, 256
      %56 = vsyncadd [#allocation10], %s55
      %s57 = sshll.u32 [#allocation9], 4
      %s58 = int_to_ptr.vmem [resolvable:$true] %s57
      %63 = dma.hbm_to_vmem [thread:$0]  %s3, 256, %s58, [#allocation10], 64, 64, 4
    $region17: #{neural_network_forward.1} parent=1 // pred_fallthru
      _
    // Predicated region
    $region18: #{neural_network_forward.1} parent=1 // pred_check
      _
    $region19: #{neural_network_forward.1} parent=1 // pred_check_branch
      %65 = sbr.rel (0) target = $region21
    $region20: #{neural_network_forward.1} parent=1 // pred_region
      %s67 = ssub.s32 512, 512
      %68 = vsyncadd [#allocation10], %s67
      %s69 = sshll.u32 [#allocation11], 4
      %s70 = int_to_ptr.vmem [resolvable:$true] %s69
      %75 = dma.hbm_to_vmem [thread:$0]  %s4, 512, %s70, [#allocation10], 128, 128, 8
    $region21: #{neural_network_forward.1} parent=1 // pred_fallthru
      _
    // Predicated region
    $region22: #{neural_network_forward.1} parent=1 // pred_check
      _
    $region23: #{neural_network_forward.1} parent=1 // pred_check_branch
      %77 = sbr.rel (0) target = $region25
    $region24: #{neural_network_forward.1} parent=1 // pred_region
      _
    $region25: #{neural_network_forward.1} parent=1 // pred_fallthru
      _
    // Predicated region
    $region26: #{neural_network_forward.1} parent=1 // pred_check
      _
    $region27: #{neural_network_forward.1} parent=1 // pred_check_branch
      %79 = sbr.rel (0) target = $region29
    $region28: #{neural_network_forward.1} parent=1 // pred_region
      %80 = dma.done [#allocation4], 128
    $region29: #{neural_network_forward.1} parent=1 // pred_fallthru
      _
    // Predicated region
    $region30: #{neural_network_forward.1} parent=1 // pred_check
      _
    $region31: #{neural_network_forward.1} parent=1 // pred_check_branch
      %82 = sbr.rel (0) target = $region33
    $region32: #{neural_network_forward.1} parent=1 // pred_region
      %83 = dma.done [#allocation7], 1024
    $region33: #{neural_network_forward.1} parent=1 // pred_fallthru
      _
    // Predicated region
    $region34: #{neural_network_forward.1} parent=1 // pred_check
      _
    $region35: #{neural_network_forward.1} parent=1 // pred_check_branch
      %85 = sbr.rel (0) target = $region37
    $region36: #{neural_network_forward.1} parent=1 // pred_region
      %86 = dma.done [#allocation7], 256
    $region37: #{neural_network_forward.1} parent=1 // pred_fallthru
      _
    // Predicated region
    $region38: #{neural_network_forward.1} parent=1 // pred_check
      _
    $region39: #{neural_network_forward.1} parent=1 // pred_check_branch
      %88 = sbr.rel (0) target = $region41
    $region40: #{neural_network_forward.1} parent=1 // pred_region
      %89 = dma.done [#allocation10], 256
    $region41: #{neural_network_forward.1} parent=1 // pred_fallthru
      _
    // Predicated region
    $region42: #{neural_network_forward.1} parent=1 // pred_check
      _
    $region43: #{neural_network_forward.1} parent=1 // pred_check_branch
      %91 = sbr.rel (0) target = $region45
    $region44: #{neural_network_forward.1} parent=1 // pred_region
      %92 = dma.done [#allocation10], 512
    $region45: #{neural_network_forward.1} parent=1 // pred_fallthru
      _
    %v94 = vld [vmem:[#allocation6] sm:$0xf]
    %v95 = vld [vmem:[#allocation6 + $0x4] sm:$0xf]
    %v96 = vld [vmem:[#allocation6 + $0x8] sm:$0xf]
    %v97 = vld [vmem:[#allocation6 + $0xc] sm:$0xf]
    %v98 = vld [vmem:[#allocation6 + $0x10] sm:$0xf]
    %v99 = vld [vmem:[#allocation6 + $0x14] sm:$0xf]
    %v100 = vld [vmem:[#allocation6 + $0x18] sm:$0xf]
    %v101 = vld [vmem:[#allocation6 + $0x1c] sm:$0xf]
    %v102 = vld [vmem:[#allocation6 + $0x20] sm:$0xf]
    %v103 = vld [vmem:[#allocation6 + $0x24] sm:$0xf]
    %v104 = vld [vmem:[#allocation6 + $0x28] sm:$0xf]
    %v105 = vld [vmem:[#allocation6 + $0x2c] sm:$0xf]
    %v106 = vld [vmem:[#allocation6 + $0x30] sm:$0xf]
    %v107 = vld [vmem:[#allocation6 + $0x34] sm:$0xf]
    %v108 = vld [vmem:[#allocation6 + $0x38] sm:$0xf]
    %v109 = vld [vmem:[#allocation6 + $0x3c] sm:$0xf]
    %v110 = vld [vmem:[#allocation3] sm:$0xf]
    %v111 = vld [vmem:[#allocation3 + $0x4] sm:$0xf]
    %v128 = vunpack.c.l.b16 %v94
    %v129 = vunpack.c.l.b16 %v95
    %v130 = vunpack.c.l.b16 %v96
    %v131 = vunpack.c.l.b16 %v97
    %v132 = vunpack.c.l.b16 %v98
    %v133 = vunpack.c.l.b16 %v99
    %v134 = vunpack.c.l.b16 %v100
    %v135 = vunpack.c.l.b16 %v101
    %v136 = vunpack.c.l.b16 %v102
    %v137 = vunpack.c.l.b16 %v103
    %v138 = vunpack.c.l.b16 %v104
    %v139 = vunpack.c.l.b16 %v105
    %v140 = vunpack.c.l.b16 %v106
    %v141 = vunpack.c.l.b16 %v107
    %v142 = vunpack.c.l.b16 %v108
    %v143 = vunpack.c.l.b16 %v109
    %v144 = vpack.c.b16 %v129, %v128
    %v145 = vpack.c.b16 %v131, %v130
    %v146 = vpack.c.b16 %v133, %v132
    %v147 = vpack.c.b16 %v135, %v134
    %v148 = vpack.c.b16 %v137, %v136
    %v149 = vpack.c.b16 %v139, %v138
    %v150 = vpack.c.b16 %v141, %v140
    %v151 = vpack.c.b16 %v143, %v142
    %v154 = vunpack.c.l.b16 %v110
    %v155 = vunpack.c.l.b16 %v111
    %v156 = vpack.c.b16 %v155, %v154
    %vm158 = vcmask 130048
    %v160 = vsel %vm158, %v144, 0
    %v163 = vsel %vm158, %v145, 0
    %v166 = vsel %vm158, %v146, 0
    %v169 = vsel %vm158, %v147, 0
    %v172 = vsel %vm158, %v148, 0
    %v175 = vsel %vm158, %v149, 0
    %v178 = vsel %vm158, %v150, 0
    %v181 = vsel %vm158, %v151, 0
    %183 = vmatprep.subr.bf16.mxu0 0
    %184 = vmatpush1.bf16.msra.mxu0 %v156
    %185 = vmatprep.subr.bf16.mxu0 0
    %186 = vmatpush1.bf16.msra.mxu0 0
    %187 = vmatprep.subr.bf16.mxu0 0
    %188 = vmatpush1.bf16.msra.mxu0 0
    %189 = vmatprep.subr.bf16.mxu0 0
    %190 = vmatpush1.bf16.msra.mxu0 0
    %191 = vmatprep.subr.bf16.mxu0 0
    %192 = vmatpush1.bf16.msra.mxu0 0
    %193 = vmatprep.subr.bf16.mxu0 0
    %194 = vmatpush1.bf16.msra.mxu0 0
    %195 = vmatprep.subr.bf16.mxu0 0
    %196 = vmatpush1.bf16.msra.mxu0 0
    %197 = vmatprep.subr.bf16.mxu0 0
    %198 = vmatpush1.bf16.msra.mxu0 0
    %199 = vmatprep.subr.bf16.mxu0 0
    %200 = vmatpush1.bf16.msra.mxu0 0
    %201 = vmatprep.subr.bf16.mxu0 0
    %202 = vmatpush1.bf16.msra.mxu0 0
    %203 = vmatprep.subr.bf16.mxu0 0
    %204 = vmatpush1.bf16.msra.mxu0 0
    %205 = vmatprep.subr.bf16.mxu0 0
    %206 = vmatpush1.bf16.msra.mxu0 0
    %207 = vmatprep.subr.bf16.mxu0 0
    %208 = vmatpush1.bf16.msra.mxu0 0
    %209 = vmatprep.subr.bf16.mxu0 0
    %210 = vmatpush1.bf16.msra.mxu0 0
    %211 = vmatprep.subr.bf16.mxu0 0
    %212 = vmatpush1.bf16.msra.mxu0 0
    %213 = vmatprep.subr.bf16.mxu0 0
    %214 = vmatpush1.bf16.msra.mxu0 0
    %215 = vmatprep.mubr.bf16.mxu0 0
    %216 = vmatmul.mubr.bf16.gmra.mrb[0].mxu0 %v160
    %v217 = vpop.f32.mrb[0].mxu0
    %v218 = vadd.f32 0.0, %v217
    %v219 = vpop.f32.mrb[0].mxu0
    %v220 = vpop.f32.mrb[0].mxu0
    %v221 = vadd.f32 0.0, %v220
    %v222 = vpop.f32.mrb[0].mxu0
    %223 = vmatprep.mubr.bf16.mxu0 0
    %224 = vmatmul.mubr.bf16.gmra.mrb[0].mxu0 %v163
    %v225 = vpop.f32.mrb[0].mxu0
    %v226 = vadd.f32 0.0, %v225
    %v227 = vpop.f32.mrb[0].mxu0
    %v228 = vpop.f32.mrb[0].mxu0
    %v229 = vadd.f32 0.0, %v228
    %v230 = vpop.f32.mrb[0].mxu0
    %231 = vmatprep.mubr.bf16.mxu0 0
    %232 = vmatmul.mubr.bf16.gmra.mrb[0].mxu0 %v166
    %v233 = vpop.f32.mrb[0].mxu0
    %v234 = vadd.f32 0.0, %v233
    %v235 = vpop.f32.mrb[0].mxu0
    %v236 = vpop.f32.mrb[0].mxu0
    %v237 = vadd.f32 0.0, %v236
    %v238 = vpop.f32.mrb[0].mxu0
    %239 = vmatprep.mubr.bf16.mxu0 0
    %240 = vmatmul.mubr.bf16.gmra.mrb[0].mxu0 %v169
    %v241 = vpop.f32.mrb[0].mxu0
    %v242 = vadd.f32 0.0, %v241
    %v243 = vpop.f32.mrb[0].mxu0
    %v244 = vpop.f32.mrb[0].mxu0
    %v245 = vadd.f32 0.0, %v244
    %v246 = vpop.f32.mrb[0].mxu0
    %247 = vmatprep.mubr.bf16.mxu0 0
    %248 = vmatmul.mubr.bf16.gmra.mrb[0].mxu0 %v172
    %v249 = vpop.f32.mrb[0].mxu0
    %v250 = vadd.f32 0.0, %v249
    %v251 = vpop.f32.mrb[0].mxu0
    %v252 = vpop.f32.mrb[0].mxu0
    %v253 = vadd.f32 0.0, %v252
    %v254 = vpop.f32.mrb[0].mxu0
    %255 = vmatprep.mubr.bf16.mxu0 0
    %256 = vmatmul.mubr.bf16.gmra.mrb[0].mxu0 %v175
    %v257 = vpop.f32.mrb[0].mxu0
    %v258 = vadd.f32 0.0, %v257
    %v259 = vpop.f32.mrb[0].mxu0
    %v260 = vpop.f32.mrb[0].mxu0
    %v261 = vadd.f32 0.0, %v260
    %v262 = vpop.f32.mrb[0].mxu0
    %263 = vmatprep.mubr.bf16.mxu0 0
    %264 = vmatmul.mubr.bf16.gmra.mrb[0].mxu0 %v178
    %v265 = vpop.f32.mrb[0].mxu0
    %v266 = vadd.f32 0.0, %v265
    %v267 = vpop.f32.mrb[0].mxu0
    %v268 = vpop.f32.mrb[0].mxu0
    %v269 = vadd.f32 0.0, %v268
    %v270 = vpop.f32.mrb[0].mxu0
    %271 = vmatprep.mubr.bf16.mxu0 0
    %272 = vmatmul.mubr.bf16.gmra.mrb[0].mxu0 %v181
    %v273 = vpop.f32.mrb[0].mxu0
    %v274 = vadd.f32 0.0, %v273
    %v275 = vpop.f32.mrb[0].mxu0
    %v276 = vpop.f32.mrb[0].mxu0
    %v277 = vadd.f32 0.0, %v276
    %v278 = vpop.f32.mrb[0].mxu0
    %279 = vdwg.mxu0
    %v280 = vpack.c.bf16 %v221, %v218
    %v281 = vpack.c.bf16 %v229, %v226
    %v282 = vpack.c.bf16 %v237, %v234
    %v283 = vpack.c.bf16 %v245, %v242
    %v284 = vpack.c.bf16 %v253, %v250
    %v285 = vpack.c.bf16 %v261, %v258
    %v286 = vpack.c.bf16 %v269, %v266
    %v287 = vpack.c.bf16 %v277, %v274
    %v288 = vmax.bf16 %v280, 0
    %v289 = vmax.bf16 %v281, 0
    %v290 = vmax.bf16 %v282, 0
    %v291 = vmax.bf16 %v283, 0
    %v292 = vmax.bf16 %v284, 0
    %v293 = vmax.bf16 %v285, 0
    %v294 = vmax.bf16 %v286, 0
    %v295 = vmax.bf16 %v287, 0
    %v296 = vld [vmem:[#allocation8] sm:$0xf]
    %v297 = vld [vmem:[#allocation8 + $0x4] sm:$0xf]
    %v298 = vld [vmem:[#allocation8 + $0x8] sm:$0xf]
    %v299 = vld [vmem:[#allocation8 + $0xc] sm:$0xf]
    %v304 = vunpack.c.l.b16 %v296
    %v305 = vunpack.c.l.b16 %v297
    %v306 = vunpack.c.l.b16 %v298
    %v307 = vunpack.c.l.b16 %v299
    %v308 = vpack.c.b16 %v305, %v304
    %v309 = vpack.c.b16 %v307, %v306
    %312 = vmatprep.subr.bf16.mxu0 0
    %313 = vmatpush1.bf16.msra.mxu0 %v288
    %314 = vmatprep.subr.bf16.mxu0 0
    %315 = vmatpush1.bf16.msra.mxu0 %v289
    %316 = vmatprep.subr.bf16.mxu0 0
    %317 = vmatpush1.bf16.msra.mxu0 %v290
    %318 = vmatprep.subr.bf16.mxu0 0
    %319 = vmatpush1.bf16.msra.mxu0 %v291
    %320 = vmatprep.subr.bf16.mxu0 0
    %321 = vmatpush1.bf16.msra.mxu0 %v292
    %322 = vmatprep.subr.bf16.mxu0 0
    %323 = vmatpush1.bf16.msra.mxu0 %v293
    %324 = vmatprep.subr.bf16.mxu0 0
    %325 = vmatpush1.bf16.msra.mxu0 %v294
    %326 = vmatprep.subr.bf16.mxu0 0
    %327 = vmatpush1.bf16.msra.mxu0 %v295
    %328 = vmatprep.subr.bf16.mxu0 0
    %329 = vmatpush1.bf16.msra.mxu0 0
    %330 = vmatprep.subr.bf16.mxu0 0
    %331 = vmatpush1.bf16.msra.mxu0 0
    %332 = vmatprep.subr.bf16.mxu0 0
    %333 = vmatpush1.bf16.msra.mxu0 0
    %334 = vmatprep.subr.bf16.mxu0 0
    %335 = vmatpush1.bf16.msra.mxu0 0
    %336 = vmatprep.subr.bf16.mxu0 0
    %337 = vmatpush1.bf16.msra.mxu0 0
    %338 = vmatprep.subr.bf16.mxu0 0
    %339 = vmatpush1.bf16.msra.mxu0 0
    %340 = vmatprep.subr.bf16.mxu0 0
    %341 = vmatpush1.bf16.msra.mxu0 0
    %342 = vmatprep.subr.bf16.mxu0 0
    %343 = vmatpush1.bf16.msra.mxu0 0
    %344 = vmatprep.mubr.bf16.mxu0 0
    %345 = vmatmul.mubr.bf16.gmra.mrb[0].mxu0 %v308
    %v346 = vpop.f32.mrb[0].mxu0
    %v347 = vadd.f32 0.0, %v346
    %v348 = vpop.f32.mrb[0].mxu0
    %v349 = vpop.f32.mrb[0].mxu0
    %v350 = vadd.f32 0.0, %v349
    %v351 = vpop.f32.mrb[0].mxu0
    %352 = vmatprep.mubr.bf16.mxu0 0
    %353 = vmatmul.mubr.bf16.gmra.mrb[0].mxu0 %v309
    %v354 = vpop.f32.mrb[0].mxu0
    %v355 = vadd.f32 0.0, %v354
    %v356 = vpop.f32.mrb[0].mxu0
    %v357 = vpop.f32.mrb[0].mxu0
    %v358 = vadd.f32 0.0, %v357
    %v359 = vpop.f32.mrb[0].mxu0
    %360 = vdwg.mxu0
    %v361 = vpack.c.bf16 %v350, %v347
    %v362 = vpack.c.bf16 %v358, %v355
    %v363 = vld [vmem:[#allocation9] sm:$0xf]
    %v364 = vld [vmem:[#allocation9 + $0x4] sm:$0xf]
    %v365 = vld [vmem:[#allocation9 + $0x8] sm:$0xf]
    %v366 = vld [vmem:[#allocation9 + $0xc] sm:$0xf]
    %368 = vset.pattern.permute.xlu0 0
    %369 = vperm.xlu0 %368, %v363
    %v370 = vpop.permute.xlu0 %369
    %v373 = vunpack.c.l.s4 839922192
    %v374 = vunpack.c.0.s8 %v373
    %v375 = vlaneseq
    %v376 = vshrl.u32 %v375, 7
    %v377 = vsub.s32 %v374, %v376
    %v378 = vrot.slane %v370, %v377
    %380 = vset.pattern.permute.xlu0 0
    %381 = vperm.xlu0 %380, %v364
    %v382 = vpop.permute.xlu0 %381
    %v385 = vunpack.c.l.s4 839922192
    %v386 = vunpack.c.0.s8 %v385
    %v387 = vlaneseq
    %v388 = vshrl.u32 %v387, 7
    %v389 = vsub.s32 %v386, %v388
    %v390 = vrot.slane %v382, %v389
    %392 = vset.pattern.permute.xlu0 0
    %393 = vperm.xlu0 %392, %v365
    %v394 = vpop.permute.xlu0 %393
    %v397 = vunpack.c.l.s4 839922192
    %v398 = vunpack.c.0.s8 %v397
    %v399 = vlaneseq
    %v400 = vshrl.u32 %v399, 7
    %v401 = vsub.s32 %v398, %v400
    %v402 = vrot.slane %v394, %v401
    %404 = vset.pattern.permute.xlu0 0
    %405 = vperm.xlu0 %404, %v366
    %v406 = vpop.permute.xlu0 %405
    %v409 = vunpack.c.l.s4 839922192
    %v410 = vunpack.c.0.s8 %v409
    %v411 = vlaneseq
    %v412 = vshrl.u32 %v411, 7
    %v413 = vsub.s32 %v410, %v412
    %v414 = vrot.slane %v406, %v413
    %v419 = vunpack.c.l.b16 %v378
    %v420 = vunpack.c.l.b16 %v390
    %v421 = vunpack.c.l.b16 %v402
    %v422 = vunpack.c.l.b16 %v414
    %v423 = vpack.c.b16 %v420, %v419
    %v424 = vpack.c.b16 %v422, %v421
    %v427 = vadd.bf16 %v361, %v423
    %v428 = vadd.bf16 %v362, %v424
    %v429 = vmax.bf16 %v427, 0
    %v430 = vmax.bf16 %v428, 0
    %v431 = vld [vmem:[#allocation11] sm:$0xff]
    %v432 = vld [vmem:[#allocation11 + $0x8] sm:$0xff]
    %v433 = vld [vmem:[#allocation11 + $0x10] sm:$0xff]
    %v434 = vld [vmem:[#allocation11 + $0x18] sm:$0xff]
    %v435 = vunpack.c.l.bf16 %v429
    %v436 = vunpack.c.h.bf16 %v429
    %v437 = vunpack.c.l.bf16 %v430
    %v438 = vunpack.c.h.bf16 %v430
    %440 = vset.pattern.permute.xlu0 0
    %441 = vperm.xlu0 %440, %v431
    %v442 = vpop.permute.xlu0 %441
    %445 = vset.pattern.permute.xlu0 0
    %446 = vperm.xlu0 %445, %v432
    %v447 = vpop.permute.xlu0 %446
    %450 = vset.pattern.permute.xlu0 0
    %451 = vperm.xlu0 %450, %v433
    %v452 = vpop.permute.xlu0 %451
    %455 = vset.pattern.permute.xlu0 0
    %456 = vperm.xlu0 %455, %v434
    %v457 = vpop.permute.xlu0 %456
    %v459 = vmul.f32 %v435, %v442
    %v460 = vmul.f32 %v436, %v447
    %v461 = vmul.f32 %v437, %v452
    %v462 = vmul.f32 %v438, %v457
    %v463 = vadd.f32 %v459, %v460
    %v464 = vadd.f32 %v463, %v461
    %v465 = vadd.f32 %v464, %v462
    %v466 = vrot.slane %v465, 4
    %v467 = vadd.f32 %v465, %v466
    %v468 = vrot.slane %v467, 2
    %v469 = vadd.f32 %v467, %v468
    %v470 = vrot.slane %v469, 1
    %v471 = vadd.f32 %v469, %v470
    %s472 = sld [smem:[#allocation2]]
    %v473 = vstv %s472
    %v474 = vadd.f32 %v471, %v473
    %v475 = vsub.f32 0.0, %v474
    %v476 = vmul.f32 %v475, 1.442695
    %v477 = vpow.pop %v476
    %v478 = vadd.f32 %v477, 1.0
    %v479 = vrcp.pop %v478
    %480 = vst [vmem:[#allocation12] sm:$0x1] %v479
    // Predicated region
    $region46: #{neural_network_forward.1} parent=1 // pred_check
      _
    $region47: #{neural_network_forward.1} parent=1 // pred_check_branch
      %482 = sbr.rel (0) target = $region49
    $region48: #{neural_network_forward.1} parent=1 // pred_region
      %s484 = ssub.s32 16, 16
      %485 = vsyncadd [#allocation5], %s484
      %s487 = sshll.u32 [#allocation12], 4
      %s488 = int_to_ptr.vmem [resolvable:$true] %s487
      %490 = dma.vmem_to_hbm [thread:$0]  %s488, 16, %s6, [#allocation5]
    $region49: #{neural_network_forward.1} parent=1 // pred_fallthru
      _
    // Predicated region
    $region50: #{neural_network_forward.1} parent=1 // pred_check
      _
    $region51: #{neural_network_forward.1} parent=1 // pred_check_branch
      %492 = sbr.rel (0) target = $region53
    $region52: #{neural_network_forward.1} parent=1 // pred_region
      %493 = dma.done [#allocation5], 16
    $region53: #{neural_network_forward.1} parent=1 // pred_fallthru
      _
    %494 = vsyncpa [#allocation4], 1
    %495 = vsyncpa [#allocation7], 1
    %496 = vsyncpa [#allocation10], 1
    %497 = vsyncpa [#allocation5], 1

</llo_original>
